<compile_context>
chip_gen: v7x
topology: tpu7x:2x2x1
jax: 0.10.0
libtpu: 0.0.40
codegen_flags: <defaults>
</compile_context>

<pallas_src>
from functools import partial

import jax
import jax.numpy as jnp
from jax.experimental import pallas as pl
from jax.experimental.pallas import tpu as pltpu

_LENGTH_INPUTS = 10
_H1 = 300          # _DEFAULT_FIRST_MIDDLE_LAYER_SIZE
_H2 = 300          # _DEFAULT_SECOND_MIDDLE_LAYER_SIZE
_LANE = 128

_K_IN = _LENGTH_INPUTS + 1   # 10 features + constant-1 column (carries b1)
_H1P = 384                   # lane dim of w2t -> must be multiple of 128; row 300 = b2 carrier
_H2P = 304                   # sublane-only dim; multiple of 16 (bf16 tiling); row 300 = b3 carrier


def _round_up(n, m):
    return (n + m - 1) // m * m


def _maxnet_kernel(xt_ref, w1t_ref, w2t_ref, w3_ref, o_ref):
    # Transposed layout: batch on lanes.  Biases are folded into the weights
    # via carrier rows/columns, so the chain is just matmul -> ReLU.
    # fc1 (+b1) + ReLU:  (H1P, 11) @ (11, TB) -> (H1P, TB), f32 accumulate on MXU.
    h1 = jnp.dot(w1t_ref[...], xt_ref[...], preferred_element_type=jnp.float32)
    h1 = jnp.maximum(h1, 0.0).astype(jnp.bfloat16)
    # fc2 (+b2) + ReLU:  (H2P, H1P) @ (H1P, TB) -> (H2P, TB)
    h2 = jnp.dot(w2t_ref[...], h1, preferred_element_type=jnp.float32)
    h2 = jnp.maximum(h2, 0.0)
    # fc3 (+b3) + ReLU off the MXU: N=1 matmul -> VPU multiply + sublane (XLU)
    # reduce.  Result (1, TB) is lane-dense.
    o = jnp.sum(h2 * w3_ref[...], axis=0, keepdims=True)
    o_ref[...] = jnp.maximum(o, 0.0).astype(o_ref.dtype)


def prepare_params(w1, b1, w2, b2, w3, b3):
    """Convert (in, out) weights / (1, out) biases into the transposed,
    zero-padded, bias-folded, bf16 layout the kernel consumes.
    Call once; reuse across calls."""
    # W1^T augmented with b1 as an extra input column; row _H1 is the
    # constant-1 carrier feeding b2 into fc2.
    w1t = jnp.zeros((_H1P, _K_IN), jnp.bfloat16)
    w1t = w1t.at[:_H1, :_LENGTH_INPUTS].set(w1.T.astype(jnp.bfloat16))
    w1t = w1t.at[:_H1, _LENGTH_INPUTS].set(b1.reshape(-1).astype(jnp.bfloat16))
    w1t = w1t.at[_H1, _LENGTH_INPUTS].set(1.0)          # h1[300] == 1 after ReLU

    # W2^T with b2 in column _H1 (multiplied by the h1 carrier); row _H2 is
    # the constant-1 carrier feeding b3 into fc3.
    w2t = jnp.zeros((_H2P, _H1P), jnp.bfloat16)
    w2t = w2t.at[:_H2, :_H1].set(w2.T.astype(jnp.bfloat16))
    w2t = w2t.at[:_H2, _H1].set(b2.reshape(-1).astype(jnp.bfloat16))
    w2t = w2t.at[_H2, _H1].set(1.0)                     # h2[300] == 1 after ReLU

    # fc3 vector (f32) with b3 in the carrier slot.
    w3c = jnp.zeros((_H2P, 1), jnp.float32)
    w3c = w3c.at[:_H2, 0].set(w3.reshape(-1).astype(jnp.float32))
    w3c = w3c.at[_H2, 0].set(b3.reshape(()).astype(jnp.float32))
    return (w1t, w2t, w3c)


@partial(jax.jit, static_argnames=("block_b",))
def maxnet_forward(x, params, *, block_b=2048):
    """x: (B, 10) float.  params: output of prepare_params.  Returns (B, 1) f32."""
    assert block_b % _LANE == 0
    w1t, w2t, w3c = params

    B = x.shape[0]
    tb = min(block_b, _round_up(max(B, 1), _LANE))
    # Prefer >= 2 grid steps so the "parallel" batch axis can be split across
    # v7x's two TensorCores instead of leaving one idle.
    if _round_up(max(B, 1), tb) // tb < 2 and tb >= 2 * _LANE:
        tb = _round_up(tb // 2, _LANE)
    b_pad = _round_up(max(B, 1), tb)

    # Batch on lanes: ship x transposed, zero-padded, bf16, with a constant-1
    # feature row (bias carrier).
    xt = jnp.zeros((_K_IN, b_pad), jnp.bfloat16)
    xt = xt.at[:_LENGTH_INPUTS, :B].set(x.astype(jnp.bfloat16).T)
    xt = xt.at[_LENGTH_INPUTS, :].set(jnp.ones((b_pad,), jnp.bfloat16))

    pinned = lambda shape: pl.BlockSpec(shape, lambda i: (0, 0))  # weights stay VMEM-resident

    compiler_kwargs = dict(dimension_semantics=("parallel",))     # batch split across TCs
    if tb > 2048:
        # Larger tiles exceed the v5e/v6e default scoped-VMEM limits
        # (16 / 32 MiB); keep the request under v7x's 64 MiB physical VMEM.
        compiler_kwargs["vmem_limit_bytes"] = 60 * 1024 * 1024

    out_t = pl.pallas_call(
        _maxnet_kernel,
        out_shape=jax.ShapeDtypeStruct((1, b_pad), jnp.float32),
        grid=(b_pad // tb,),
        in_specs=[
            pl.BlockSpec((_K_IN, tb), lambda i: (0, i)),   # x^T tiles stream
            pinned((_H1P, _K_IN)),
            pinned((_H2P, _H1P)),
            pinned((_H2P, 1)),
        ],
        out_specs=pl.BlockSpec((1, tb), lambda i: (0, i)),  # lane-dense output
        compiler_params=pltpu.CompilerParams(**compiler_kwargs),
    )(xt, w1t, w2t, w3c)

    return out_t[0, :B].reshape(B, 1)


def _init_linear(key, fan_in, fan_out):
    # Mimic torch.nn.Linear default init: U(-1/sqrt(fan_in), 1/sqrt(fan_in)).
    kw, kb = jax.random.split(key)
    bound = 1.0 / jnp.sqrt(float(fan_in))
    w = jax.random.uniform(kw, (fan_in, fan_out), jnp.float32, -bound, bound)
    b = jax.random.uniform(kb, (1, fan_out), jnp.float32, -bound, bound)
    return w, b


def _reference(x, w1, b1, w2, b2, w3, b3):
    # Emulate the kernel's bf16 input/weight/bias quantization (f32
    # accumulation) so the comparison tolerance can stay tight.  Note this is
    # looser vs. a true f32 PyTorch _MAXNet than the 1e-3 tolerance suggests.
    f32 = jnp.float32
    q = lambda a: a.astype(jnp.bfloat16).astype(f32)
    h = jnp.maximum(q(x) @ q(w1) + q(b1), 0.0)
    h = q(h)
    h = jnp.maximum(h @ q(w2) + q(b2), 0.0)
    return jnp.maximum(h @ w3 + b3, 0.0)


if __name__ == "__main__":
    key = jax.random.PRNGKey(0)
    kx, k1, k2, k3 = jax.random.split(key, 4)

    B = 8
    x = jax.random.normal(kx, (B, _LENGTH_INPUTS), jnp.float32)

    w1, b1 = _init_linear(k1, _LENGTH_INPUTS, _H1)
    w2, b2 = _init_linear(k2, _H1, _H2)
    w3, b3 = _init_linear(k3, _H2, 1)

    params = prepare_params(w1, b1, w2, b2, w3, b3)
    out = jax.block_until_ready(maxnet_forward(x, params))

    ref = _reference(x, w1, b1, w2, b2, w3, b3)
    assert out.shape == (B, 1), out.shape
    assert jnp.allclose(out, ref, atol=1e-3, rtol=1e-3), "mismatch vs reference"

    print("KERNEL_OK")
</pallas_src>

<mosaic_0001>
module attributes {stable_mosaic.version = 11 : i64} {
  func.func @_maxnet_kernel(%arg0: i32, %arg1: memref<11x128xbf16, #tpu.memory_space<vmem>>, %arg2: memref<384x11xbf16, #tpu.memory_space<vmem>>, %arg3: memref<304x384xbf16, #tpu.memory_space<vmem>>, %arg4: memref<304x1xf32, #tpu.memory_space<vmem>>, %arg5: memref<1x128xf32, #tpu.memory_space<vmem>>) attributes {dimension_semantics = [#tpu.dimension_semantics<parallel>], iteration_bounds = array<i64: 1>, scalar_prefetch = 0 : i64, scratch_operands = 0 : i64, tpu.core_type = #tpu.core_type<tc>, window_params = [{transform_indices = @transform_0, window_bounds = array<i64: 11, 128>}, {pipeline_mode = #tpu.pipeline_mode<synchronous>, transform_indices = @transform_1, window_bounds = array<i64: 384, 11>}, {pipeline_mode = #tpu.pipeline_mode<synchronous>, transform_indices = @transform_2, window_bounds = array<i64: 304, 384>}, {pipeline_mode = #tpu.pipeline_mode<synchronous>, transform_indices = @transform_3, window_bounds = array<i64: 304, 1>}, {transform_indices = @transform_4, window_bounds = array<i64: 1, 128>}]} {
    %c0 = arith.constant 0 : index
    %c0_0 = arith.constant 0 : index
    %0 = vector.load %arg2[%c0, %c0_0] : memref<384x11xbf16, #tpu.memory_space<vmem>>, vector<384x11xbf16>
    %c0_1 = arith.constant 0 : index
    %c0_2 = arith.constant 0 : index
    %1 = vector.load %arg1[%c0_1, %c0_2] : memref<11x128xbf16, #tpu.memory_space<vmem>>, vector<11x128xbf16>
    %cst = arith.constant dense<0.000000e+00> : vector<384x128xf32>
    %2 = tpu.matmul %0, %1, %cst {dimension_numbers = #tpu.dot_dimension_numbers<[1], [0], [0], [1], [0, 0, 1, 1], [], []>} : vector<384x11xbf16>, vector<11x128xbf16>, vector<384x128xf32> -> vector<384x128xf32>
    %cst_3 = arith.constant 0.000000e+00 : f32
    %3 = vector.broadcast %cst_3 : f32 to vector<384x128xf32>
    %4 = arith.maximumf %2, %3 : vector<384x128xf32>
    %5 = arith.truncf %4 : vector<384x128xf32> to vector<384x128xbf16>
    %c0_4 = arith.constant 0 : index
    %c0_5 = arith.constant 0 : index
    %6 = vector.load %arg3[%c0_4, %c0_5] : memref<304x384xbf16, #tpu.memory_space<vmem>>, vector<304x384xbf16>
    %cst_6 = arith.constant dense<0.000000e+00> : vector<304x128xf32>
    %7 = tpu.matmul %6, %5, %cst_6 {dimension_numbers = #tpu.dot_dimension_numbers<[1], [0], [0], [1], [0, 0, 1, 1], [], []>} : vector<304x384xbf16>, vector<384x128xbf16>, vector<304x128xf32> -> vector<304x128xf32>
    %cst_7 = arith.constant 0.000000e+00 : f32
    %8 = vector.broadcast %cst_7 : f32 to vector<304x128xf32>
    %9 = arith.maximumf %7, %8 : vector<304x128xf32>
    %c0_8 = arith.constant 0 : index
    %c0_9 = arith.constant 0 : index
    %10 = vector.load %arg4[%c0_8, %c0_9] : memref<304x1xf32, #tpu.memory_space<vmem>>, vector<304x1xf32>
    %11 = vector.broadcast %10 : vector<304x1xf32> to vector<304x128xf32>
    %12 = arith.mulf %9, %11 : vector<304x128xf32>
    %cst_10 = arith.constant dense<0.000000e+00> : vector<128xf32>
    %13 = vector.multi_reduction <add>, %12, %cst_10 [0] : vector<304x128xf32> to vector<128xf32>
    %14 = vector.shape_cast %13 : vector<128xf32> to vector<1x128xf32>
    %cst_11 = arith.constant 0.000000e+00 : f32
    %15 = vector.broadcast %cst_11 : f32 to vector<1x128xf32>
    %16 = arith.maximumf %14, %15 : vector<1x128xf32>
    %c0_12 = arith.constant 0 : index
    %c0_13 = arith.constant 0 : index
    %17 = vector.load %arg5[%c0_12, %c0_13] : memref<1x128xf32, #tpu.memory_space<vmem>>, vector<1x128xf32>
    tpu.vector_store %arg5[%c0_12, %c0_13], %16 {strides = array<i32>} : memref<1x128xf32, #tpu.memory_space<vmem>>, vector<1x128xf32>,
    return
  }
  func.func @transform_0(%arg0: i32) -> (i32, i32) {
    %c0_i32 = arith.constant 0 : i32
    %c0_i32_0 = arith.constant 0 : i32
    return %c0_i32, %arg0 : i32, i32
  }
  func.func @transform_1(%arg0: i32) -> (i32, i32) {
    %c0_i32 = arith.constant 0 : i32
    %c0_i32_0 = arith.constant 0 : i32
    %c0_i32_1 = arith.constant 0 : i32
    return %c0_i32, %c0_i32_0 : i32, i32
  }
  func.func @transform_2(%arg0: i32) -> (i32, i32) {
    %c0_i32 = arith.constant 0 : i32
    %c0_i32_0 = arith.constant 0 : i32
    %c0_i32_1 = arith.constant 0 : i32
    return %c0_i32, %c0_i32_0 : i32, i32
  }
  func.func @transform_3(%arg0: i32) -> (i32, i32) {
    %c0_i32 = arith.constant 0 : i32
    %c0_i32_0 = arith.constant 0 : i32
    %c0_i32_1 = arith.constant 0 : i32
    return %c0_i32, %c0_i32_0 : i32, i32
  }
  func.func @transform_4(%arg0: i32) -> (i32, i32) {
    %c0_i32 = arith.constant 0 : i32
    %c0_i32_0 = arith.constant 0 : i32
    return %c0_i32, %arg0 : i32, i32
  }
}

</mosaic_0001>

<llo_original>
// kernel: maxnet_forward.1
$region0: #{maxnet_forward.1}
  #allocation0 [shape = 'u32[]', space=smem, size = 0x4, offset = 0x4, fixed_abs, tag = 'smem constant byte address 0x4 - core index']
  #allocation1 [shape = 'u32[144,128]{1,0:T(1,128)}', space=vmem, size = 0x12000, scoped, tag = 'internal scratch']
  %s0 = inlined_call_operand.vmem [shape: bf16[11,128], index: 0, kind: input, shape index: {}]
  %s1 = inlined_call_operand.vmem [shape: bf16[384,11], index: 1, kind: input, shape index: {}]
  %s2 = inlined_call_operand.vmem [shape: bf16[304,384], index: 2, kind: input, shape index: {}]
  %s3 = inlined_call_operand.vmem [shape: f32[304,1], index: 3, kind: input, shape index: {}]
  %s4 = inlined_call_operand.vmem [shape: f32[1,128], index: 4, kind: output, shape index: {}]
  %s5 = sld [smem:[#allocation0]]
  $region26: #{maxnet_forward.1} parent=0
    _
  %s7 = ssub.s32 1, %s5
  %s8 = scalar_select 0, %s7, %s5
  // Predicated region
  $region2: #{maxnet_forward.1} parent=0 // pred_check
    _
  $region3: #{maxnet_forward.1} parent=0 // pred_check_branch
    %10 = sbr.rel (0) target = $region5
  $region4: #{maxnet_forward.1} parent=0 // pred_region
    _
  $region5: #{maxnet_forward.1} parent=0 // pred_fallthru
    _
  // Predicated region
  $region6: #{maxnet_forward.1} parent=0 // pred_check
    _
  $region7: #{maxnet_forward.1} parent=0 // pred_check_branch
    %12 = sbr.rel (0) target = $region9
  $region8: #{maxnet_forward.1} parent=0 // pred_region
    _
  $region9: #{maxnet_forward.1} parent=0 // pred_fallthru
    _
  // Predicated region
  $region10: #{maxnet_forward.1} parent=0 // pred_check
    _
  $region11: #{maxnet_forward.1} parent=0 // pred_check_branch
    %14 = sbr.rel (0) target = $region13
  $region12: #{maxnet_forward.1} parent=0 // pred_region
    _
  $region13: #{maxnet_forward.1} parent=0 // pred_fallthru
    _
  // Predicated region
  $region14: #{maxnet_forward.1} parent=0 // pred_check
    _
  $region15: #{maxnet_forward.1} parent=0 // pred_check_branch
    %16 = sbr.rel (0) target = $region17
  $region16: #{maxnet_forward.1} parent=0 // pred_region
    _
  $region17: #{maxnet_forward.1} parent=0 // pred_fallthru
    _
  %v18 = vld [vmem:[%s1] sm:$0xf]
  %v19 = vld [vmem:[%s1 + $0x4] sm:$0xf]
  %v20 = vld [vmem:[%s1 + $0x8] sm:$0xf]
  %v21 = vld [vmem:[%s1 + $0xc] sm:$0xf]
  %v22 = vld [vmem:[%s1 + $0x10] sm:$0xf]
  %v23 = vld [vmem:[%s1 + $0x14] sm:$0xf]
  %v24 = vld [vmem:[%s1 + $0x18] sm:$0xf]
  %v25 = vld [vmem:[%s1 + $0x1c] sm:$0xf]
  %v26 = vld [vmem:[%s1 + $0x20] sm:$0xf]
  %v27 = vld [vmem:[%s1 + $0x24] sm:$0xf]
  %v28 = vld [vmem:[%s1 + $0x28] sm:$0xf]
  %v29 = vld [vmem:[%s1 + $0x2c] sm:$0xf]
  %v30 = vld [vmem:[%s1 + $0x30] sm:$0xf]
  %v31 = vld [vmem:[%s1 + $0x34] sm:$0xf]
  %v32 = vld [vmem:[%s1 + $0x38] sm:$0xf]
  %v33 = vld [vmem:[%s1 + $0x3c] sm:$0xf]
  %v34 = vld [vmem:[%s1 + $0x40] sm:$0xf]
  %v35 = vld [vmem:[%s1 + $0x44] sm:$0xf]
  %v36 = vld [vmem:[%s1 + $0x48] sm:$0xf]
  %v37 = vld [vmem:[%s1 + $0x4c] sm:$0xf]
  %v38 = vld [vmem:[%s1 + $0x50] sm:$0xf]
  %v39 = vld [vmem:[%s1 + $0x54] sm:$0xf]
  %v40 = vld [vmem:[%s1 + $0x58] sm:$0xf]
  %v41 = vld [vmem:[%s1 + $0x5c] sm:$0xf]
  %v42 = vld [vmem:[%s1 + $0x60] sm:$0xf]
  %v43 = vld [vmem:[%s1 + $0x64] sm:$0xf]
  %v44 = vld [vmem:[%s1 + $0x68] sm:$0xf]
  %v45 = vld [vmem:[%s1 + $0x6c] sm:$0xf]
  %v46 = vld [vmem:[%s1 + $0x70] sm:$0xf]
  %v47 = vld [vmem:[%s1 + $0x74] sm:$0xf]
  %v48 = vld [vmem:[%s1 + $0x78] sm:$0xf]
  %v49 = vld [vmem:[%s1 + $0x7c] sm:$0xf]
  %v50 = vld [vmem:[%s1 + $0x80] sm:$0xf]
  %v51 = vld [vmem:[%s1 + $0x84] sm:$0xf]
  %v52 = vld [vmem:[%s1 + $0x88] sm:$0xf]
  %v53 = vld [vmem:[%s1 + $0x8c] sm:$0xf]
  %v54 = vld [vmem:[%s1 + $0x90] sm:$0xf]
  %v55 = vld [vmem:[%s1 + $0x94] sm:$0xf]
  %v56 = vld [vmem:[%s1 + $0x98] sm:$0xf]
  %v57 = vld [vmem:[%s1 + $0x9c] sm:$0xf]
  %v58 = vld [vmem:[%s1 + $0xa0] sm:$0xf]
  %v59 = vld [vmem:[%s1 + $0xa4] sm:$0xf]
  %v60 = vld [vmem:[%s1 + $0xa8] sm:$0xf]
  %v61 = vld [vmem:[%s1 + $0xac] sm:$0xf]
  %v62 = vld [vmem:[%s1 + $0xb0] sm:$0xf]
  %v63 = vld [vmem:[%s1 + $0xb4] sm:$0xf]
  %v64 = vld [vmem:[%s1 + $0xb8] sm:$0xf]
  %v65 = vld [vmem:[%s1 + $0xbc] sm:$0xf]
  %v66 = vld [vmem:[%s0] sm:$0xf]
  %v67 = vld [vmem:[%s0 + $0x4] sm:$0x3]
  %v116 = vunpack.c.l.b16 %v18
  %v117 = vunpack.c.l.b16 %v19
  %v118 = vunpack.c.l.b16 %v20
  %v119 = vunpack.c.l.b16 %v21
  %v120 = vunpack.c.l.b16 %v22
  %v121 = vunpack.c.l.b16 %v23
  %v122 = vunpack.c.l.b16 %v24
  %v123 = vunpack.c.l.b16 %v25
  %v124 = vunpack.c.l.b16 %v26
  %v125 = vunpack.c.l.b16 %v27
  %v126 = vunpack.c.l.b16 %v28
  %v127 = vunpack.c.l.b16 %v29
  %v128 = vunpack.c.l.b16 %v30
  %v129 = vunpack.c.l.b16 %v31
  %v130 = vunpack.c.l.b16 %v32
  %v131 = vunpack.c.l.b16 %v33
  %v132 = vunpack.c.l.b16 %v34
  %v133 = vunpack.c.l.b16 %v35
  %v134 = vunpack.c.l.b16 %v36
  %v135 = vunpack.c.l.b16 %v37
  %v136 = vunpack.c.l.b16 %v38
  %v137 = vunpack.c.l.b16 %v39
  %v138 = vunpack.c.l.b16 %v40
  %v139 = vunpack.c.l.b16 %v41
  %v140 = vunpack.c.l.b16 %v42
  %v141 = vunpack.c.l.b16 %v43
  %v142 = vunpack.c.l.b16 %v44
  %v143 = vunpack.c.l.b16 %v45
  %v144 = vunpack.c.l.b16 %v46
  %v145 = vunpack.c.l.b16 %v47
  %v146 = vunpack.c.l.b16 %v48
  %v147 = vunpack.c.l.b16 %v49
  %v148 = vunpack.c.l.b16 %v50
  %v149 = vunpack.c.l.b16 %v51
  %v150 = vunpack.c.l.b16 %v52
  %v151 = vunpack.c.l.b16 %v53
  %v152 = vunpack.c.l.b16 %v54
  %v153 = vunpack.c.l.b16 %v55
  %v154 = vunpack.c.l.b16 %v56
  %v155 = vunpack.c.l.b16 %v57
  %v156 = vunpack.c.l.b16 %v58
  %v157 = vunpack.c.l.b16 %v59
  %v158 = vunpack.c.l.b16 %v60
  %v159 = vunpack.c.l.b16 %v61
  %v160 = vunpack.c.l.b16 %v62
  %v161 = vunpack.c.l.b16 %v63
  %v162 = vunpack.c.l.b16 %v64
  %v163 = vunpack.c.l.b16 %v65
  %v164 = vpack.c.b16 %v117, %v116
  %v165 = vpack.c.b16 %v119, %v118
  %v166 = vpack.c.b16 %v121, %v120
  %v167 = vpack.c.b16 %v123, %v122
  %v168 = vpack.c.b16 %v125, %v124
  %v169 = vpack.c.b16 %v127, %v126
  %v170 = vpack.c.b16 %v129, %v128
  %v171 = vpack.c.b16 %v131, %v130
  %v172 = vpack.c.b16 %v133, %v132
  %v173 = vpack.c.b16 %v135, %v134
  %v174 = vpack.c.b16 %v137, %v136
  %v175 = vpack.c.b16 %v139, %v138
  %v176 = vpack.c.b16 %v141, %v140
  %v177 = vpack.c.b16 %v143, %v142
  %v178 = vpack.c.b16 %v145, %v144
  %v179 = vpack.c.b16 %v147, %v146
  %v180 = vpack.c.b16 %v149, %v148
  %v181 = vpack.c.b16 %v151, %v150
  %v182 = vpack.c.b16 %v153, %v152
  %v183 = vpack.c.b16 %v155, %v154
  %v184 = vpack.c.b16 %v157, %v156
  %v185 = vpack.c.b16 %v159, %v158
  %v186 = vpack.c.b16 %v161, %v160
  %v187 = vpack.c.b16 %v163, %v162
  %v190 = vunpack.c.l.b16 %v66
  %v191 = vunpack.c.l.b16 %v67
  %v192 = vpack.c.b16 %v191, %v190
  %vm193 = vcmask 89088
  %v195 = vsel %vm193, %v164, 0
  %v198 = vsel %vm193, %v165, 0
  %v201 = vsel %vm193, %v166, 0
  %v204 = vsel %vm193, %v167, 0
  %v207 = vsel %vm193, %v168, 0
  %v210 = vsel %vm193, %v169, 0
  %v213 = vsel %vm193, %v170, 0
  %v216 = vsel %vm193, %v171, 0
  %v219 = vsel %vm193, %v172, 0
  %v222 = vsel %vm193, %v173, 0
  %v225 = vsel %vm193, %v174, 0
  %v228 = vsel %vm193, %v175, 0
  %v231 = vsel %vm193, %v176, 0
  %v234 = vsel %vm193, %v177, 0
  %v237 = vsel %vm193, %v178, 0
  %v240 = vsel %vm193, %v179, 0
  %v243 = vsel %vm193, %v180, 0
  %v246 = vsel %vm193, %v181, 0
  %v249 = vsel %vm193, %v182, 0
  %v252 = vsel %vm193, %v183, 0
  %v255 = vsel %vm193, %v184, 0
  %v258 = vsel %vm193, %v185, 0
  %v261 = vsel %vm193, %v186, 0
  %v264 = vsel %vm193, %v187, 0
  %vm266 = vcmask 1044480
  %vm267 = vcmask 1045504
  %v268 = vsel %vm266, 4294967295, 65535
  %v269 = vsel %vm267, %v268, 0
  %v271 = vand.u32 %v192, %v269
  %273 = vmatprep.subr.bf16.mxu0 0
  %274 = vmatpush1.bf16.msra.mxu0 %v271
  %275 = vmatprep.subr.bf16.mxu0 0
  %276 = vmatpush1.bf16.msra.mxu0 0
  %277 = vmatprep.subr.bf16.mxu0 0
  %278 = vmatpush1.bf16.msra.mxu0 0
  %279 = vmatprep.subr.bf16.mxu0 0
  %280 = vmatpush1.bf16.msra.mxu0 0
  %281 = vmatprep.subr.bf16.mxu0 0
  %282 = vmatpush1.bf16.msra.mxu0 0
  %283 = vmatprep.subr.bf16.mxu0 0
  %284 = vmatpush1.bf16.msra.mxu0 0
  %285 = vmatprep.subr.bf16.mxu0 0
  %286 = vmatpush1.bf16.msra.mxu0 0
  %287 = vmatprep.subr.bf16.mxu0 0
  %288 = vmatpush1.bf16.msra.mxu0 0
  %289 = vmatprep.subr.bf16.mxu0 0
  %290 = vmatpush1.bf16.msra.mxu0 0
  %291 = vmatprep.subr.bf16.mxu0 0
  %292 = vmatpush1.bf16.msra.mxu0 0
  %293 = vmatprep.subr.bf16.mxu0 0
  %294 = vmatpush1.bf16.msra.mxu0 0
  %295 = vmatprep.subr.bf16.mxu0 0
  %296 = vmatpush1.bf16.msra.mxu0 0
  %297 = vmatprep.subr.bf16.mxu0 0
  %298 = vmatpush1.bf16.msra.mxu0 0
  %299 = vmatprep.subr.bf16.mxu0 0
  %300 = vmatpush1.bf16.msra.mxu0 0
  %301 = vmatprep.subr.bf16.mxu0 0
  %302 = vmatpush1.bf16.msra.mxu0 0
  %303 = vmatprep.subr.bf16.mxu0 0
  %304 = vmatpush1.bf16.msra.mxu0 0
  %305 = vmatprep.mubr.bf16.mxu0 0
  %306 = vmatmul.mubr.bf16.gmra.mrb[0].mxu0 %v195
  %v307 = vpop.f32.mrb[0].mxu0
  %v308 = vadd.f32 0.0, %v307
  %v309 = vpop.f32.mrb[0].mxu0
  %v310 = vpop.f32.mrb[0].mxu0
  %v311 = vadd.f32 0.0, %v310
  %v312 = vpop.f32.mrb[0].mxu0
  %313 = vmatprep.mubr.bf16.mxu0 0
  %314 = vmatmul.mubr.bf16.gmra.mrb[0].mxu0 %v198
  %v315 = vpop.f32.mrb[0].mxu0
  %v316 = vadd.f32 0.0, %v315
  %v317 = vpop.f32.mrb[0].mxu0
  %v318 = vpop.f32.mrb[0].mxu0
  %v319 = vadd.f32 0.0, %v318
  %v320 = vpop.f32.mrb[0].mxu0
  %321 = vmatprep.mubr.bf16.mxu0 0
  %322 = vmatmul.mubr.bf16.gmra.mrb[0].mxu0 %v201
  %v323 = vpop.f32.mrb[0].mxu0
  %v324 = vadd.f32 0.0, %v323
  %v325 = vpop.f32.mrb[0].mxu0
  %v326 = vpop.f32.mrb[0].mxu0
  %v327 = vadd.f32 0.0, %v326
  %v328 = vpop.f32.mrb[0].mxu0
  %329 = vmatprep.mubr.bf16.mxu0 0
  %330 = vmatmul.mubr.bf16.gmra.mrb[0].mxu0 %v204
  %v331 = vpop.f32.mrb[0].mxu0
  %v332 = vadd.f32 0.0, %v331
  %v333 = vpop.f32.mrb[0].mxu0
  %v334 = vpop.f32.mrb[0].mxu0
  %v335 = vadd.f32 0.0, %v334
  %v336 = vpop.f32.mrb[0].mxu0
  %337 = vmatprep.mubr.bf16.mxu0 0
  %338 = vmatmul.mubr.bf16.gmra.mrb[0].mxu0 %v207
  %v339 = vpop.f32.mrb[0].mxu0
  %v340 = vadd.f32 0.0, %v339
  %v341 = vpop.f32.mrb[0].mxu0
  %v342 = vpop.f32.mrb[0].mxu0
  %v343 = vadd.f32 0.0, %v342
  %v344 = vpop.f32.mrb[0].mxu0
  %345 = vmatprep.mubr.bf16.mxu0 0
  %346 = vmatmul.mubr.bf16.gmra.mrb[0].mxu0 %v210
  %v347 = vpop.f32.mrb[0].mxu0
  %v348 = vadd.f32 0.0, %v347
  %v349 = vpop.f32.mrb[0].mxu0
  %v350 = vpop.f32.mrb[0].mxu0
  %v351 = vadd.f32 0.0, %v350
  %v352 = vpop.f32.mrb[0].mxu0
  %353 = vmatprep.mubr.bf16.mxu0 0
  %354 = vmatmul.mubr.bf16.gmra.mrb[0].mxu0 %v213
  %v355 = vpop.f32.mrb[0].mxu0
  %v356 = vadd.f32 0.0, %v355
  %v357 = vpop.f32.mrb[0].mxu0
  %v358 = vpop.f32.mrb[0].mxu0
  %v359 = vadd.f32 0.0, %v358
  %v360 = vpop.f32.mrb[0].mxu0
  %361 = vmatprep.mubr.bf16.mxu0 0
  %362 = vmatmul.mubr.bf16.gmra.mrb[0].mxu0 %v216
  %v363 = vpop.f32.mrb[0].mxu0
  %v364 = vadd.f32 0.0, %v363
  %v365 = vpop.f32.mrb[0].mxu0
  %v366 = vpop.f32.mrb[0].mxu0
  %v367 = vadd.f32 0.0, %v366
  %v368 = vpop.f32.mrb[0].mxu0
  %369 = vmatprep.mubr.bf16.mxu0 0
  %370 = vmatmul.mubr.bf16.gmra.mrb[0].mxu0 %v219
  %v371 = vpop.f32.mrb[0].mxu0
  %v372 = vadd.f32 0.0, %v371
  %v373 = vpop.f32.mrb[0].mxu0
  %v374 = vpop.f32.mrb[0].mxu0
  %v375 = vadd.f32 0.0, %v374
  %v376 = vpop.f32.mrb[0].mxu0
  %377 = vmatprep.mubr.bf16.mxu0 0
  %378 = vmatmul.mubr.bf16.gmra.mrb[0].mxu0 %v222
  %v379 = vpop.f32.mrb[0].mxu0
  %v380 = vadd.f32 0.0, %v379
  %v381 = vpop.f32.mrb[0].mxu0
  %v382 = vpop.f32.mrb[0].mxu0
  %v383 = vadd.f32 0.0, %v382
  %v384 = vpop.f32.mrb[0].mxu0
  %385 = vmatprep.mubr.bf16.mxu0 0
  %386 = vmatmul.mubr.bf16.gmra.mrb[0].mxu0 %v225
  %v387 = vpop.f32.mrb[0].mxu0
  %v388 = vadd.f32 0.0, %v387
  %v389 = vpop.f32.mrb[0].mxu0
  %v390 = vpop.f32.mrb[0].mxu0
  %v391 = vadd.f32 0.0, %v390
  %v392 = vpop.f32.mrb[0].mxu0
  %393 = vmatprep.mubr.bf16.mxu0 0
  %394 = vmatmul.mubr.bf16.gmra.mrb[0].mxu0 %v228
  %v395 = vpop.f32.mrb[0].mxu0
  %v396 = vadd.f32 0.0, %v395
  %v397 = vpop.f32.mrb[0].mxu0
  %v398 = vpop.f32.mrb[0].mxu0
  %v399 = vadd.f32 0.0, %v398
  %v400 = vpop.f32.mrb[0].mxu0
  %401 = vmatprep.mubr.bf16.mxu0 0
  %402 = vmatmul.mubr.bf16.gmra.mrb[0].mxu0 %v231
  %v403 = vpop.f32.mrb[0].mxu0
  %v404 = vadd.f32 0.0, %v403
  %v405 = vpop.f32.mrb[0].mxu0
  %v406 = vpop.f32.mrb[0].mxu0
  %v407 = vadd.f32 0.0, %v406
  %v408 = vpop.f32.mrb[0].mxu0
  %409 = vmatprep.mubr.bf16.mxu0 0
  %410 = vmatmul.mubr.bf16.gmra.mrb[0].mxu0 %v234
  %v411 = vpop.f32.mrb[0].mxu0
  %v412 = vadd.f32 0.0, %v411
  %v413 = vpop.f32.mrb[0].mxu0
  %v414 = vpop.f32.mrb[0].mxu0
  %v415 = vadd.f32 0.0, %v414
  %v416 = vpop.f32.mrb[0].mxu0
  %417 = vmatprep.mubr.bf16.mxu0 0
  %418 = vmatmul.mubr.bf16.gmra.mrb[0].mxu0 %v237
  %v419 = vpop.f32.mrb[0].mxu0
  %v420 = vadd.f32 0.0, %v419
  %v421 = vpop.f32.mrb[0].mxu0
  %v422 = vpop.f32.mrb[0].mxu0
  %v423 = vadd.f32 0.0, %v422
  %v424 = vpop.f32.mrb[0].mxu0
  %425 = vmatprep.mubr.bf16.mxu0 0
  %426 = vmatmul.mubr.bf16.gmra.mrb[0].mxu0 %v240
  %v427 = vpop.f32.mrb[0].mxu0
  %v428 = vadd.f32 0.0, %v427
  %v429 = vpop.f32.mrb[0].mxu0
  %v430 = vpop.f32.mrb[0].mxu0
  %v431 = vadd.f32 0.0, %v430
  %v432 = vpop.f32.mrb[0].mxu0
  %433 = vmatprep.mubr.bf16.mxu0 0
  %434 = vmatmul.mubr.bf16.gmra.mrb[0].mxu0 %v243
  %v435 = vpop.f32.mrb[0].mxu0
  %v436 = vadd.f32 0.0, %v435
  %v437 = vpop.f32.mrb[0].mxu0
  %v438 = vpop.f32.mrb[0].mxu0
  %v439 = vadd.f32 0.0, %v438
  %v440 = vpop.f32.mrb[0].mxu0
  %441 = vmatprep.mubr.bf16.mxu0 0
  %442 = vmatmul.mubr.bf16.gmra.mrb[0].mxu0 %v246
  %v443 = vpop.f32.mrb[0].mxu0
  %v444 = vadd.f32 0.0, %v443
  %v445 = vpop.f32.mrb[0].mxu0
  %v446 = vpop.f32.mrb[0].mxu0
  %v447 = vadd.f32 0.0, %v446
  %v448 = vpop.f32.mrb[0].mxu0
  %449 = vmatprep.mubr.bf16.mxu0 0
  %450 = vmatmul.mubr.bf16.gmra.mrb[0].mxu0 %v249
  %v451 = vpop.f32.mrb[0].mxu0
  %v452 = vadd.f32 0.0, %v451
  %v453 = vpop.f32.mrb[0].mxu0
  %v454 = vpop.f32.mrb[0].mxu0
  %v455 = vadd.f32 0.0, %v454
  %v456 = vpop.f32.mrb[0].mxu0
  %457 = vmatprep.mubr.bf16.mxu0 0
  %458 = vmatmul.mubr.bf16.gmra.mrb[0].mxu0 %v252
  %v459 = vpop.f32.mrb[0].mxu0
  %v460 = vadd.f32 0.0, %v459
  %v461 = vpop.f32.mrb[0].mxu0
  %v462 = vpop.f32.mrb[0].mxu0
  %v463 = vadd.f32 0.0, %v462
  %v464 = vpop.f32.mrb[0].mxu0
  %465 = vmatprep.mubr.bf16.mxu0 0
  %466 = vmatmul.mubr.bf16.gmra.mrb[0].mxu0 %v255
  %v467 = vpop.f32.mrb[0].mxu0
  %v468 = vadd.f32 0.0, %v467
  %v469 = vpop.f32.mrb[0].mxu0
  %v470 = vpop.f32.mrb[0].mxu0
  %v471 = vadd.f32 0.0, %v470
  %v472 = vpop.f32.mrb[0].mxu0
  %473 = vmatprep.mubr.bf16.mxu0 0
  %474 = vmatmul.mubr.bf16.gmra.mrb[0].mxu0 %v258
  %v475 = vpop.f32.mrb[0].mxu0
  %v476 = vadd.f32 0.0, %v475
  %v477 = vpop.f32.mrb[0].mxu0
  %v478 = vpop.f32.mrb[0].mxu0
  %v479 = vadd.f32 0.0, %v478
  %v480 = vpop.f32.mrb[0].mxu0
  %481 = vmatprep.mubr.bf16.mxu0 0
  %482 = vmatmul.mubr.bf16.gmra.mrb[0].mxu0 %v261
  %v483 = vpop.f32.mrb[0].mxu0
  %v484 = vadd.f32 0.0, %v483
  %v485 = vpop.f32.mrb[0].mxu0
  %v486 = vpop.f32.mrb[0].mxu0
  %v487 = vadd.f32 0.0, %v486
  %v488 = vpop.f32.mrb[0].mxu0
  %489 = vmatprep.mubr.bf16.mxu0 0
  %490 = vmatmul.mubr.bf16.gmra.mrb[0].mxu0 %v264
  %v491 = vpop.f32.mrb[0].mxu0
  %v492 = vadd.f32 0.0, %v491
  %v493 = vpop.f32.mrb[0].mxu0
  %v494 = vpop.f32.mrb[0].mxu0
  %v495 = vadd.f32 0.0, %v494
  %v496 = vpop.f32.mrb[0].mxu0
  %497 = vdwg.mxu0
  %v498 = vmax.f32 %v308, 0.0
  %v499 = vmax.f32 %v311, 0.0
  %v500 = vmax.f32 %v316, 0.0
  %v501 = vmax.f32 %v319, 0.0
  %v502 = vmax.f32 %v324, 0.0
  %v503 = vmax.f32 %v327, 0.0
  %v504 = vmax.f32 %v332, 0.0
  %v505 = vmax.f32 %v335, 0.0
  %v506 = vmax.f32 %v340, 0.0
  %v507 = vmax.f32 %v343, 0.0
  %v508 = vmax.f32 %v348, 0.0
  %v509 = vmax.f32 %v351, 0.0
  %v510 = vmax.f32 %v356, 0.0
  %v511 = vmax.f32 %v359, 0.0
  %v512 = vmax.f32 %v364, 0.0
  %v513 = vmax.f32 %v367, 0.0
  %v514 = vmax.f32 %v372, 0.0
  %v515 = vmax.f32 %v375, 0.0
  %v516 = vmax.f32 %v380, 0.0
  %v517 = vmax.f32 %v383, 0.0
  %v518 = vmax.f32 %v388, 0.0
  %v519 = vmax.f32 %v391, 0.0
  %v520 = vmax.f32 %v396, 0.0
  %v521 = vmax.f32 %v399, 0.0
  %v522 = vmax.f32 %v404, 0.0
  %v523 = vmax.f32 %v407, 0.0
  %v524 = vmax.f32 %v412, 0.0
  %v525 = vmax.f32 %v415, 0.0
  %v526 = vmax.f32 %v420, 0.0
  %v527 = vmax.f32 %v423, 0.0
  %v528 = vmax.f32 %v428, 0.0
  %v529 = vmax.f32 %v431, 0.0
  %v530 = vmax.f32 %v436, 0.0
  %v531 = vmax.f32 %v439, 0.0
  %v532 = vmax.f32 %v444, 0.0
  %v533 = vmax.f32 %v447, 0.0
  %v534 = vmax.f32 %v452, 0.0
  %v535 = vmax.f32 %v455, 0.0
  %v536 = vmax.f32 %v460, 0.0
  %v537 = vmax.f32 %v463, 0.0
  %v538 = vmax.f32 %v468, 0.0
  %v539 = vmax.f32 %v471, 0.0
  %v540 = vmax.f32 %v476, 0.0
  %v541 = vmax.f32 %v479, 0.0
  %v542 = vmax.f32 %v484, 0.0
  %v543 = vmax.f32 %v487, 0.0
  %v544 = vmax.f32 %v492, 0.0
  %v545 = vmax.f32 %v495, 0.0
  %v546 = vpack.c.bf16 %v499, %v498
  %v547 = vpack.c.bf16 %v501, %v500
  %v548 = vpack.c.bf16 %v503, %v502
  %v549 = vpack.c.bf16 %v505, %v504
  %v550 = vpack.c.bf16 %v507, %v506
  %v551 = vpack.c.bf16 %v509, %v508
  %v552 = vpack.c.bf16 %v511, %v510
  %v553 = vpack.c.bf16 %v513, %v512
  %v554 = vpack.c.bf16 %v515, %v514
  %v555 = vpack.c.bf16 %v517, %v516
  %v556 = vpack.c.bf16 %v519, %v518
  %v557 = vpack.c.bf16 %v521, %v520
  %v558 = vpack.c.bf16 %v523, %v522
  %v559 = vpack.c.bf16 %v525, %v524
  %v560 = vpack.c.bf16 %v527, %v526
  %v561 = vpack.c.bf16 %v529, %v528
  %v562 = vpack.c.bf16 %v531, %v530
  %v563 = vpack.c.bf16 %v533, %v532
  %v564 = vpack.c.bf16 %v535, %v534
  %v565 = vpack.c.bf16 %v537, %v536
  %v566 = vpack.c.bf16 %v539, %v538
  %v567 = vpack.c.bf16 %v541, %v540
  %v568 = vpack.c.bf16 %v543, %v542
  %v569 = vpack.c.bf16 %v545, %v544
  %v570 = vld [vmem:[%s2] sm:$0xff]
  %v571 = vld [vmem:[%s2 + $0x8] sm:$0xf]
  %v572 = vld [vmem:[%s2 + $0xc] sm:$0xff]
  %v573 = vld [vmem:[%s2 + $0x14] sm:$0xf]
  %v574 = vld [vmem:[%s2 + $0x18] sm:$0xff]
  %v575 = vld [vmem:[%s2 + $0x20] sm:$0xf]
  %v576 = vld [vmem:[%s2 + $0x24] sm:$0xff]
  %v577 = vld [vmem:[%s2 + $0x2c] sm:$0xf]
  %v578 = vld [vmem:[%s2 + $0x30] sm:$0xff]
  %v579 = vld [vmem:[%s2 + $0x38] sm:$0xf]
  %v580 = vld [vmem:[%s2 + $0x3c] sm:$0xff]
  %v581 = vld [vmem:[%s2 + $0x44] sm:$0xf]
  %v582 = vld [vmem:[%s2 + $0x48] sm:$0xff]
  %v583 = vld [vmem:[%s2 + $0x50] sm:$0xf]
  %v584 = vld [vmem:[%s2 + $0x54] sm:$0xff]
  %v585 = vld [vmem:[%s2 + $0x5c] sm:$0xf]
  %v586 = vld [vmem:[%s2 + $0x60] sm:$0xff]
  %v587 = vld [vmem:[%s2 + $0x68] sm:$0xf]
  %v588 = vld [vmem:[%s2 + $0x6c] sm:$0xff]
  %v589 = vld [vmem:[%s2 + $0x74] sm:$0xf]
  %v590 = vld [vmem:[%s2 + $0x78] sm:$0xff]
  %v591 = vld [vmem:[%s2 + $0x80] sm:$0xf]
  %v592 = vld [vmem:[%s2 + $0x84] sm:$0xff]
  %v593 = vld [vmem:[%s2 + $0x8c] sm:$0xf]
  %v594 = vld [vmem:[%s2 + $0x90] sm:$0xff]
  %v595 = vld [vmem:[%s2 + $0x98] sm:$0xf]
  %v596 = vld [vmem:[%s2 + $0x9c] sm:$0xff]
  %v597 = vld [vmem:[%s2 + $0xa4] sm:$0xf]
  %v598 = vld [vmem:[%s2 + $0xa8] sm:$0xff]
  %v599 = vld [vmem:[%s2 + $0xb0] sm:$0xf]
  %v600 = vld [vmem:[%s2 + $0xb4] sm:$0xff]
  %v601 = vld [vmem:[%s2 + $0xbc] sm:$0xf]
  %v602 = vld [vmem:[%s2 + $0xc0] sm:$0xff]
  %v603 = vld [vmem:[%s2 + $0xc8] sm:$0xf]
  %v604 = vld [vmem:[%s2 + $0xcc] sm:$0xff]
  %v605 = vld [vmem:[%s2 + $0xd4] sm:$0xf]
  %v606 = vld [vmem:[%s2 + $0xd8] sm:$0xff]
  %v607 = vld [vmem:[%s2 + $0xe0] sm:$0xf]
  %v608 = vld [vmem:[%s2 + $0xe4] sm:$0xff]
  %v609 = vld [vmem:[%s2 + $0xec] sm:$0xf]
  %v610 = vld [vmem:[%s2 + $0xf0] sm:$0xff]
  %v611 = vld [vmem:[%s2 + $0xf8] sm:$0xf]
  %v612 = vld [vmem:[%s2 + $0xfc] sm:$0xff]
  %v613 = vld [vmem:[%s2 + $0x104] sm:$0xf]
  %v614 = vld [vmem:[%s2 + $0x108] sm:$0xff]
  %v615 = vld [vmem:[%s2 + $0x110] sm:$0xf]
  %v616 = vld [vmem:[%s2 + $0x114] sm:$0xff]
  %v617 = vld [vmem:[%s2 + $0x11c] sm:$0xf]
  %v618 = vld [vmem:[%s2 + $0x120] sm:$0xff]
  %v619 = vld [vmem:[%s2 + $0x128] sm:$0xf]
  %v620 = vld [vmem:[%s2 + $0x12c] sm:$0xff]
  %v621 = vld [vmem:[%s2 + $0x134] sm:$0xf]
  %v622 = vld [vmem:[%s2 + $0x138] sm:$0xff]
  %v623 = vld [vmem:[%s2 + $0x140] sm:$0xf]
  %v624 = vld [vmem:[%s2 + $0x144] sm:$0xff]
  %v625 = vld [vmem:[%s2 + $0x14c] sm:$0xf]
  %v626 = vld [vmem:[%s2 + $0x150] sm:$0xff]
  %v627 = vld [vmem:[%s2 + $0x158] sm:$0xf]
  %v628 = vld [vmem:[%s2 + $0x15c] sm:$0xff]
  %v629 = vld [vmem:[%s2 + $0x164] sm:$0xf]
  %v630 = vld [vmem:[%s2 + $0x168] sm:$0xff]
  %v631 = vld [vmem:[%s2 + $0x170] sm:$0xf]
  %v632 = vld [vmem:[%s2 + $0x174] sm:$0xff]
  %v633 = vld [vmem:[%s2 + $0x17c] sm:$0xf]
  %v634 = vld [vmem:[%s2 + $0x180] sm:$0xff]
  %v635 = vld [vmem:[%s2 + $0x188] sm:$0xf]
  %v636 = vld [vmem:[%s2 + $0x18c] sm:$0xff]
  %v637 = vld [vmem:[%s2 + $0x194] sm:$0xf]
  %v638 = vld [vmem:[%s2 + $0x198] sm:$0xff]
  %v639 = vld [vmem:[%s2 + $0x1a0] sm:$0xf]
  %v640 = vld [vmem:[%s2 + $0x1a4] sm:$0xff]
  %v641 = vld [vmem:[%s2 + $0x1ac] sm:$0xf]
  %v642 = vld [vmem:[%s2 + $0x1b0] sm:$0xff]
  %v643 = vld [vmem:[%s2 + $0x1b8] sm:$0xf]
  %v644 = vld [vmem:[%s2 + $0x1bc] sm:$0xff]
  %v645 = vld [vmem:[%s2 + $0x1c4] sm:$0xf]
  %v722 = vunpack.c.l.b16 %v570
  %v723 = vunpack.c.h.b16 %v570
  %v724 = vunpack.c.l.b16 %v571
  %v725 = vunpack.c.l.b16 %v572
  %v726 = vunpack.c.h.b16 %v572
  %v727 = vunpack.c.l.b16 %v573
  %v728 = vunpack.c.l.b16 %v574
  %v729 = vunpack.c.h.b16 %v574
  %v730 = vunpack.c.l.b16 %v575
  %v731 = vunpack.c.l.b16 %v576
  %v732 = vunpack.c.h.b16 %v576
  %v733 = vunpack.c.l.b16 %v577
  %v734 = vunpack.c.l.b16 %v578
  %v735 = vunpack.c.h.b16 %v578
  %v736 = vunpack.c.l.b16 %v579
  %v737 = vunpack.c.l.b16 %v580
  %v738 = vunpack.c.h.b16 %v580
  %v739 = vunpack.c.l.b16 %v581
  %v740 = vunpack.c.l.b16 %v582
  %v741 = vunpack.c.h.b16 %v582
  %v742 = vunpack.c.l.b16 %v583
  %v743 = vunpack.c.l.b16 %v584
  %v744 = vunpack.c.h.b16 %v584
  %v745 = vunpack.c.l.b16 %v585
  %v746 = vunpack.c.l.b16 %v586
  %v747 = vunpack.c.h.b16 %v586
  %v748 = vunpack.c.l.b16 %v587
  %v749 = vunpack.c.l.b16 %v588
  %v750 = vunpack.c.h.b16 %v588
  %v751 = vunpack.c.l.b16 %v589
  %v752 = vunpack.c.l.b16 %v590
  %v753 = vunpack.c.h.b16 %v590
  %v754 = vunpack.c.l.b16 %v591
  %v755 = vunpack.c.l.b16 %v592
  %v756 = vunpack.c.h.b16 %v592
  %v757 = vunpack.c.l.b16 %v593
  %v758 = vunpack.c.l.b16 %v594
  %v759 = vunpack.c.h.b16 %v594
  %v760 = vunpack.c.l.b16 %v595
  %v761 = vunpack.c.l.b16 %v596
  %v762 = vunpack.c.h.b16 %v596
  %v763 = vunpack.c.l.b16 %v597
  %v764 = vunpack.c.l.b16 %v598
  %v765 = vunpack.c.h.b16 %v598
  %v766 = vunpack.c.l.b16 %v599
  %v767 = vunpack.c.l.b16 %v600
  %v768 = vunpack.c.h.b16 %v600
  %v769 = vunpack.c.l.b16 %v601
  %v770 = vunpack.c.l.b16 %v602
  %v771 = vunpack.c.h.b16 %v602
  %v772 = vunpack.c.l.b16 %v603
  %v773 = vunpack.c.l.b16 %v604
  %v774 = vunpack.c.h.b16 %v604
  %v775 = vunpack.c.l.b16 %v605
  %v776 = vunpack.c.l.b16 %v606
  %v777 = vunpack.c.h.b16 %v606
  %v778 = vunpack.c.l.b16 %v607
  %v779 = vunpack.c.l.b16 %v608
  %v780 = vunpack.c.h.b16 %v608
  %v781 = vunpack.c.l.b16 %v609
  %v782 = vunpack.c.l.b16 %v610
  %v783 = vunpack.c.h.b16 %v610
  %v784 = vunpack.c.l.b16 %v611
  %v785 = vunpack.c.l.b16 %v612
  %v786 = vunpack.c.h.b16 %v612
  %v787 = vunpack.c.l.b16 %v613
  %v788 = vunpack.c.l.b16 %v614
  %v789 = vunpack.c.h.b16 %v614
  %v790 = vunpack.c.l.b16 %v615
  %v791 = vunpack.c.l.b16 %v616
  %v792 = vunpack.c.h.b16 %v616
  %v793 = vunpack.c.l.b16 %v617
  %v794 = vunpack.c.l.b16 %v618
  %v795 = vunpack.c.h.b16 %v618
  %v796 = vunpack.c.l.b16 %v619
  %v797 = vunpack.c.l.b16 %v620
  %v798 = vunpack.c.h.b16 %v620
  %v799 = vunpack.c.l.b16 %v621
  %v800 = vunpack.c.l.b16 %v622
  %v801 = vunpack.c.h.b16 %v622
  %v802 = vunpack.c.l.b16 %v623
  %v803 = vunpack.c.l.b16 %v624
  %v804 = vunpack.c.h.b16 %v624
  %v805 = vunpack.c.l.b16 %v625
  %v806 = vunpack.c.l.b16 %v626
  %v807 = vunpack.c.h.b16 %v626
  %v808 = vunpack.c.l.b16 %v627
  %v809 = vunpack.c.l.b16 %v628
  %v810 = vunpack.c.h.b16 %v628
  %v811 = vunpack.c.l.b16 %v629
  %v812 = vunpack.c.l.b16 %v630
  %v813 = vunpack.c.h.b16 %v630
  %v814 = vunpack.c.l.b16 %v631
  %v815 = vunpack.c.l.b16 %v632
  %v816 = vunpack.c.h.b16 %v632
  %v817 = vunpack.c.l.b16 %v633
  %v818 = vunpack.c.l.b16 %v634
  %v819 = vunpack.c.h.b16 %v634
  %v820 = vunpack.c.l.b16 %v635
  %v821 = vunpack.c.l.b16 %v636
  %v822 = vunpack.c.h.b16 %v636
  %v823 = vunpack.c.l.b16 %v637
  %v824 = vunpack.c.l.b16 %v638
  %v825 = vunpack.c.h.b16 %v638
  %v826 = vunpack.c.l.b16 %v639
  %v827 = vunpack.c.l.b16 %v640
  %v828 = vunpack.c.h.b16 %v640
  %v829 = vunpack.c.l.b16 %v641
  %v830 = vunpack.c.l.b16 %v642
  %v831 = vunpack.c.h.b16 %v642
  %v832 = vunpack.c.l.b16 %v643
  %v833 = vunpack.c.l.b16 %v644
  %v834 = vunpack.c.h.b16 %v644
  %v835 = vunpack.c.l.b16 %v645
  %v836 = vpack.c.b16 %v725, %v722
  %v837 = vpack.c.b16 %v726, %v723
  %v838 = vpack.c.b16 %v727, %v724
  %v839 = vpack.c.b16 %v731, %v728
  %v840 = vpack.c.b16 %v732, %v729
  %v841 = vpack.c.b16 %v733, %v730
  %v842 = vpack.c.b16 %v737, %v734
  %v843 = vpack.c.b16 %v738, %v735
  %v844 = vpack.c.b16 %v739, %v736
  %v845 = vpack.c.b16 %v743, %v740
  %v846 = vpack.c.b16 %v744, %v741
  %v847 = vpack.c.b16 %v745, %v742
  %v848 = vpack.c.b16 %v749, %v746
  %v849 = vpack.c.b16 %v750, %v747
  %v850 = vpack.c.b16 %v751, %v748
  %v851 = vpack.c.b16 %v755, %v752
  %v852 = vpack.c.b16 %v756, %v753
  %v853 = vpack.c.b16 %v757, %v754
  %v854 = vpack.c.b16 %v761, %v758
  %v855 = vpack.c.b16 %v762, %v759
  %v856 = vpack.c.b16 %v763, %v760
  %v857 = vpack.c.b16 %v767, %v764
  %v858 = vpack.c.b16 %v768, %v765
  %v859 = vpack.c.b16 %v769, %v766
  %v860 = vpack.c.b16 %v773, %v770
  %v861 = vpack.c.b16 %v774, %v771
  %v862 = vpack.c.b16 %v775, %v772
  %v863 = vpack.c.b16 %v779, %v776
  %v864 = vpack.c.b16 %v780, %v777
  %v865 = vpack.c.b16 %v781, %v778
  %v866 = vpack.c.b16 %v785, %v782
  %v867 = vpack.c.b16 %v786, %v783
  %v868 = vpack.c.b16 %v787, %v784
  %v869 = vpack.c.b16 %v791, %v788
  %v870 = vpack.c.b16 %v792, %v789
  %v871 = vpack.c.b16 %v793, %v790
  %v872 = vpack.c.b16 %v797, %v794
  %v873 = vpack.c.b16 %v798, %v795
  %v874 = vpack.c.b16 %v799, %v796
  %v875 = vpack.c.b16 %v803, %v800
  %v876 = vpack.c.b16 %v804, %v801
  %v877 = vpack.c.b16 %v805, %v802
  %v878 = vpack.c.b16 %v809, %v806
  %v879 = vpack.c.b16 %v810, %v807
  %v880 = vpack.c.b16 %v811, %v808
  %v881 = vpack.c.b16 %v815, %v812
  %v882 = vpack.c.b16 %v816, %v813
  %v883 = vpack.c.b16 %v817, %v814
  %v884 = vpack.c.b16 %v821, %v818
  %v885 = vpack.c.b16 %v822, %v819
  %v886 = vpack.c.b16 %v823, %v820
  %v887 = vpack.c.b16 %v827, %v824
  %v888 = vpack.c.b16 %v828, %v825
  %v889 = vpack.c.b16 %v829, %v826
  %v890 = vpack.c.b16 %v833, %v830
  %v891 = vpack.c.b16 %v834, %v831
  %v892 = vpack.c.b16 %v835, %v832
  %950 = vmatprep.subr.bf16.mxu0 0
  %951 = vmatpush1.bf16.msra.mxu0 %v546
  %952 = vmatprep.subr.bf16.mxu0 0
  %953 = vmatpush1.bf16.msra.mxu0 %v547
  %954 = vmatprep.subr.bf16.mxu0 0
  %955 = vmatpush1.bf16.msra.mxu0 %v548
  %956 = vmatprep.subr.bf16.mxu0 0
  %957 = vmatpush1.bf16.msra.mxu0 %v549
  %958 = vmatprep.subr.bf16.mxu0 0
  %959 = vmatpush1.bf16.msra.mxu0 %v550
  %960 = vmatprep.subr.bf16.mxu0 0
  %961 = vmatpush1.bf16.msra.mxu0 %v551
  %962 = vmatprep.subr.bf16.mxu0 0
  %963 = vmatpush1.bf16.msra.mxu0 %v552
  %964 = vmatprep.subr.bf16.mxu0 0
  %965 = vmatpush1.bf16.msra.mxu0 %v553
  %966 = vmatprep.subr.bf16.mxu0 0
  %967 = vmatpush1.bf16.msra.mxu0 %v554
  %968 = vmatprep.subr.bf16.mxu0 0
  %969 = vmatpush1.bf16.msra.mxu0 %v555
  %970 = vmatprep.subr.bf16.mxu0 0
  %971 = vmatpush1.bf16.msra.mxu0 %v556
  %972 = vmatprep.subr.bf16.mxu0 0
  %973 = vmatpush1.bf16.msra.mxu0 %v557
  %974 = vmatprep.subr.bf16.mxu0 0
  %975 = vmatpush1.bf16.msra.mxu0 %v558
  %976 = vmatprep.subr.bf16.mxu0 0
  %977 = vmatpush1.bf16.msra.mxu0 %v559
  %978 = vmatprep.subr.bf16.mxu0 0
  %979 = vmatpush1.bf16.msra.mxu0 %v560
  %980 = vmatprep.subr.bf16.mxu0 0
  %981 = vmatpush1.bf16.msra.mxu0 %v561
  %982 = vmatprep.mubr.bf16.mxu0 %v837
  %983 = vmatmul.mubr.bf16.gmra.mrb[0].mxu0 %v836
  %v984 = vpop.f32.mrb[0].mxu0
  %v985 = vadd.f32 0.0, %v984
  %v986 = vpop.f32.mrb[0].mxu0
  %v987 = vpop.f32.mrb[0].mxu0
  %v988 = vadd.f32 0.0, %v987
  %v989 = vpop.f32.mrb[0].mxu0
  %990 = vmatprep.mubr.bf16.mxu0 %v840
  %991 = vmatmul.mubr.bf16.gmra.mrb[0].mxu0 %v839
  %v992 = vpop.f32.mrb[0].mxu0
  %v993 = vadd.f32 0.0, %v992
  %v994 = vpop.f32.mrb[0].mxu0
  %v995 = vpop.f32.mrb[0].mxu0
  %v996 = vadd.f32 0.0, %v995
  %v997 = vpop.f32.mrb[0].mxu0
  %998 = vmatprep.mubr.bf16.mxu0 %v843
  %999 = vmatmul.mubr.bf16.gmra.mrb[0].mxu0 %v842
  %v1000 = vpop.f32.mrb[0].mxu0
  %v1001 = vadd.f32 0.0, %v1000
  %v1002 = vpop.f32.mrb[0].mxu0
  %v1003 = vpop.f32.mrb[0].mxu0
  %v1004 = vadd.f32 0.0, %v1003
  %v1005 = vpop.f32.mrb[0].mxu0
  %1006 = vmatprep.mubr.bf16.mxu0 %v846
  %1007 = vmatmul.mubr.bf16.gmra.mrb[0].mxu0 %v845
  %v1008 = vpop.f32.mrb[0].mxu0
  %v1009 = vadd.f32 0.0, %v1008
  %v1010 = vpop.f32.mrb[0].mxu0
  %v1011 = vpop.f32.mrb[0].mxu0
  %v1012 = vadd.f32 0.0, %v1011
  %v1013 = vpop.f32.mrb[0].mxu0
  %1014 = vmatprep.mubr.bf16.mxu0 %v849
  %1015 = vmatmul.mubr.bf16.gmra.mrb[0].mxu0 %v848
  %v1016 = vpop.f32.mrb[0].mxu0
  %v1017 = vadd.f32 0.0, %v1016
  %v1018 = vpop.f32.mrb[0].mxu0
  %v1019 = vpop.f32.mrb[0].mxu0
  %v1020 = vadd.f32 0.0, %v1019
  %v1021 = vpop.f32.mrb[0].mxu0
  %1022 = vmatprep.mubr.bf16.mxu0 %v852
  %1023 = vmatmul.mubr.bf16.gmra.mrb[0].mxu0 %v851
  %v1024 = vpop.f32.mrb[0].mxu0
  %v1025 = vadd.f32 0.0, %v1024
  %v1026 = vpop.f32.mrb[0].mxu0
  %v1027 = vpop.f32.mrb[0].mxu0
  %v1028 = vadd.f32 0.0, %v1027
  %v1029 = vpop.f32.mrb[0].mxu0
  %1030 = vmatprep.mubr.bf16.mxu0 %v855
  %1031 = vmatmul.mubr.bf16.gmra.mrb[0].mxu0 %v854
  %v1032 = vpop.f32.mrb[0].mxu0
  %v1033 = vadd.f32 0.0, %v1032
  %v1034 = vpop.f32.mrb[0].mxu0
  %v1035 = vpop.f32.mrb[0].mxu0
  %v1036 = vadd.f32 0.0, %v1035
  %v1037 = vpop.f32.mrb[0].mxu0
  %1038 = vmatprep.mubr.bf16.mxu0 %v858
  %1039 = vmatmul.mubr.bf16.gmra.mrb[0].mxu0 %v857
  %v1040 = vpop.f32.mrb[0].mxu0
  %v1041 = vadd.f32 0.0, %v1040
  %v1042 = vpop.f32.mrb[0].mxu0
  %v1043 = vpop.f32.mrb[0].mxu0
  %v1044 = vadd.f32 0.0, %v1043
  %v1045 = vpop.f32.mrb[0].mxu0
  %1046 = vmatprep.mubr.bf16.mxu0 %v861
  %1047 = vmatmul.mubr.bf16.gmra.mrb[0].mxu0 %v860
  %v1048 = vpop.f32.mrb[0].mxu0
  %v1049 = vadd.f32 0.0, %v1048
  %v1050 = vpop.f32.mrb[0].mxu0
  %v1051 = vpop.f32.mrb[0].mxu0
  %v1052 = vadd.f32 0.0, %v1051
  %v1053 = vpop.f32.mrb[0].mxu0
  %1054 = vmatprep.mubr.bf16.mxu0 %v864
  %1055 = vmatmul.mubr.bf16.gmra.mrb[0].mxu0 %v863
  %v1056 = vpop.f32.mrb[0].mxu0
  %v1057 = vadd.f32 0.0, %v1056
  %v1058 = vpop.f32.mrb[0].mxu0
  %v1059 = vpop.f32.mrb[0].mxu0
  %v1060 = vadd.f32 0.0, %v1059
  %v1061 = vpop.f32.mrb[0].mxu0
  %1062 = vmatprep.mubr.bf16.mxu0 %v867
  %1063 = vmatmul.mubr.bf16.gmra.mrb[0].mxu0 %v866
  %v1064 = vpop.f32.mrb[0].mxu0
  %v1065 = vadd.f32 0.0, %v1064
  %v1066 = vpop.f32.mrb[0].mxu0
  %v1067 = vpop.f32.mrb[0].mxu0
  %v1068 = vadd.f32 0.0, %v1067
  %v1069 = vpop.f32.mrb[0].mxu0
  %1070 = vmatprep.mubr.bf16.mxu0 %v870
  %1071 = vmatmul.mubr.bf16.gmra.mrb[0].mxu0 %v869
  %v1072 = vpop.f32.mrb[0].mxu0
  %v1073 = vadd.f32 0.0, %v1072
  %v1074 = vpop.f32.mrb[0].mxu0
  %v1075 = vpop.f32.mrb[0].mxu0
  %v1076 = vadd.f32 0.0, %v1075
  %v1077 = vpop.f32.mrb[0].mxu0
  %1078 = vmatprep.mubr.bf16.mxu0 %v873
  %1079 = vmatmul.mubr.bf16.gmra.mrb[0].mxu0 %v872
  %v1080 = vpop.f32.mrb[0].mxu0
  %v1081 = vadd.f32 0.0, %v1080
  %v1082 = vpop.f32.mrb[0].mxu0
  %v1083 = vpop.f32.mrb[0].mxu0
  %v1084 = vadd.f32 0.0, %v1083
  %v1085 = vpop.f32.mrb[0].mxu0
  %1086 = vmatprep.mubr.bf16.mxu0 %v876
  %1087 = vmatmul.mubr.bf16.gmra.mrb[0].mxu0 %v875
  %v1088 = vpop.f32.mrb[0].mxu0
  %v1089 = vadd.f32 0.0, %v1088
  %v1090 = vpop.f32.mrb[0].mxu0
  %v1091 = vpop.f32.mrb[0].mxu0
  %v1092 = vadd.f32 0.0, %v1091
  %v1093 = vpop.f32.mrb[0].mxu0
  %1094 = vmatprep.mubr.bf16.mxu0 %v879
  %1095 = vmatmul.mubr.bf16.gmra.mrb[0].mxu0 %v878
  %v1096 = vpop.f32.mrb[0].mxu0
  %v1097 = vadd.f32 0.0, %v1096
  %v1098 = vpop.f32.mrb[0].mxu0
  %v1099 = vpop.f32.mrb[0].mxu0
  %v1100 = vadd.f32 0.0, %v1099
  %v1101 = vpop.f32.mrb[0].mxu0
  %1102 = vmatprep.mubr.bf16.mxu0 %v882
  %1103 = vmatmul.mubr.bf16.gmra.mrb[0].mxu0 %v881
  %v1104 = vpop.f32.mrb[0].mxu0
  %v1105 = vadd.f32 0.0, %v1104
  %v1106 = vpop.f32.mrb[0].mxu0
  %v1107 = vpop.f32.mrb[0].mxu0
  %v1108 = vadd.f32 0.0, %v1107
  %v1109 = vpop.f32.mrb[0].mxu0
  %1110 = vmatprep.mubr.bf16.mxu0 %v885
  %1111 = vmatmul.mubr.bf16.gmra.mrb[0].mxu0 %v884
  %v1112 = vpop.f32.mrb[0].mxu0
  %v1113 = vadd.f32 0.0, %v1112
  %v1114 = vpop.f32.mrb[0].mxu0
  %v1115 = vpop.f32.mrb[0].mxu0
  %v1116 = vadd.f32 0.0, %v1115
  %v1117 = vpop.f32.mrb[0].mxu0
  %1118 = vmatprep.mubr.bf16.mxu0 %v888
  %1119 = vmatmul.mubr.bf16.gmra.mrb[0].mxu0 %v887
  %v1120 = vpop.f32.mrb[0].mxu0
  %v1121 = vadd.f32 0.0, %v1120
  %v1122 = vpop.f32.mrb[0].mxu0
  %v1123 = vpop.f32.mrb[0].mxu0
  %v1124 = vadd.f32 0.0, %v1123
  %v1125 = vpop.f32.mrb[0].mxu0
  %1126 = vmatprep.mubr.bf16.mxu0 %v891
  %1127 = vmatmul.mubr.bf16.gmra.mrb[0].mxu0 %v890
  %v1128 = vpop.f32.mrb[0].mxu0
  %v1129 = vadd.f32 0.0, %v1128
  %v1130 = vpop.f32.mrb[0].mxu0
  %v1131 = vpop.f32.mrb[0].mxu0
  %v1132 = vadd.f32 0.0, %v1131
  %v1133 = vpop.f32.mrb[0].mxu0
  %1134 = vdwg.mxu0
  %1135 = vmatprep.subr.bf16.mxu0 0
  %1136 = vmatpush1.bf16.msra.mxu0 %v562
  %1137 = vmatprep.subr.bf16.mxu0 0
  %1138 = vmatpush1.bf16.msra.mxu0 %v563
  %1139 = vmatprep.subr.bf16.mxu0 0
  %1140 = vmatpush1.bf16.msra.mxu0 %v564
  %1141 = vmatprep.subr.bf16.mxu0 0
  %1142 = vmatpush1.bf16.msra.mxu0 %v565
  %1143 = vmatprep.subr.bf16.mxu0 0
  %1144 = vmatpush1.bf16.msra.mxu0 %v566
  %1145 = vmatprep.subr.bf16.mxu0 0
  %1146 = vmatpush1.bf16.msra.mxu0 %v567
  %1147 = vmatprep.subr.bf16.mxu0 0
  %1148 = vmatpush1.bf16.msra.mxu0 %v568
  %1149 = vmatprep.subr.bf16.mxu0 0
  %1150 = vmatpush1.bf16.msra.mxu0 %v569
  %1151 = vmatprep.subr.bf16.mxu0 0
  %1152 = vmatpush1.bf16.msra.mxu0 0
  %1153 = vmatprep.subr.bf16.mxu0 0
  %1154 = vmatpush1.bf16.msra.mxu0 0
  %1155 = vmatprep.subr.bf16.mxu0 0
  %1156 = vmatpush1.bf16.msra.mxu0 0
  %1157 = vmatprep.subr.bf16.mxu0 0
  %1158 = vmatpush1.bf16.msra.mxu0 0
  %1159 = vmatprep.subr.bf16.mxu0 0
  %1160 = vmatpush1.bf16.msra.mxu0 0
  %1161 = vmatprep.subr.bf16.mxu0 0
  %1162 = vmatpush1.bf16.msra.mxu0 0
  %1163 = vmatprep.subr.bf16.mxu0 0
  %1164 = vmatpush1.bf16.msra.mxu0 0
  %1165 = vmatprep.subr.bf16.mxu0 0
  %1166 = vmatpush1.bf16.msra.mxu0 0
  %1167 = vmatprep.mubr.bf16.mxu0 0
  %1168 = vmatmul.mubr.bf16.gmra.mrb[0].mxu0 %v838
  %v1169 = vpop.f32.mrb[0].mxu0
  %v1170 = vadd.f32 %v985, %v1169
  %v1171 = vpop.f32.mrb[0].mxu0
  %v1172 = vpop.f32.mrb[0].mxu0
  %v1173 = vadd.f32 %v988, %v1172
  %v1174 = vpop.f32.mrb[0].mxu0
  %1175 = vmatprep.mubr.bf16.mxu0 0
  %1176 = vmatmul.mubr.bf16.gmra.mrb[0].mxu0 %v841
  %v1177 = vpop.f32.mrb[0].mxu0
  %v1178 = vadd.f32 %v993, %v1177
  %v1179 = vpop.f32.mrb[0].mxu0
  %v1180 = vpop.f32.mrb[0].mxu0
  %v1181 = vadd.f32 %v996, %v1180
  %v1182 = vpop.f32.mrb[0].mxu0
  %1183 = vmatprep.mubr.bf16.mxu0 0
  %1184 = vmatmul.mubr.bf16.gmra.mrb[0].mxu0 %v844
  %v1185 = vpop.f32.mrb[0].mxu0
  %v1186 = vadd.f32 %v1001, %v1185
  %v1187 = vpop.f32.mrb[0].mxu0
  %v1188 = vpop.f32.mrb[0].mxu0
  %v1189 = vadd.f32 %v1004, %v1188
  %v1190 = vpop.f32.mrb[0].mxu0
  %1191 = vmatprep.mubr.bf16.mxu0 0
  %1192 = vmatmul.mubr.bf16.gmra.mrb[0].mxu0 %v847
  %v1193 = vpop.f32.mrb[0].mxu0
  %v1194 = vadd.f32 %v1009, %v1193
  %v1195 = vpop.f32.mrb[0].mxu0
  %v1196 = vpop.f32.mrb[0].mxu0
  %v1197 = vadd.f32 %v1012, %v1196
  %v1198 = vpop.f32.mrb[0].mxu0
  %1199 = vmatprep.mubr.bf16.mxu0 0
  %1200 = vmatmul.mubr.bf16.gmra.mrb[0].mxu0 %v850
  %v1201 = vpop.f32.mrb[0].mxu0
  %v1202 = vadd.f32 %v1017, %v1201
  %v1203 = vpop.f32.mrb[0].mxu0
  %v1204 = vpop.f32.mrb[0].mxu0
  %v1205 = vadd.f32 %v1020, %v1204
  %v1206 = vpop.f32.mrb[0].mxu0
  %1207 = vmatprep.mubr.bf16.mxu0 0
  %1208 = vmatmul.mubr.bf16.gmra.mrb[0].mxu0 %v853
  %v1209 = vpop.f32.mrb[0].mxu0
  %v1210 = vadd.f32 %v1025, %v1209
  %v1211 = vpop.f32.mrb[0].mxu0
  %v1212 = vpop.f32.mrb[0].mxu0
  %v1213 = vadd.f32 %v1028, %v1212
  %v1214 = vpop.f32.mrb[0].mxu0
  %1215 = vmatprep.mubr.bf16.mxu0 0
  %1216 = vmatmul.mubr.bf16.gmra.mrb[0].mxu0 %v856
  %v1217 = vpop.f32.mrb[0].mxu0
  %v1218 = vadd.f32 %v1033, %v1217
  %v1219 = vpop.f32.mrb[0].mxu0
  %v1220 = vpop.f32.mrb[0].mxu0
  %v1221 = vadd.f32 %v1036, %v1220
  %v1222 = vpop.f32.mrb[0].mxu0
  %1223 = vmatprep.mubr.bf16.mxu0 0
  %1224 = vmatmul.mubr.bf16.gmra.mrb[0].mxu0 %v859
  %v1225 = vpop.f32.mrb[0].mxu0
  %v1226 = vadd.f32 %v1041, %v1225
  %v1227 = vpop.f32.mrb[0].mxu0
  %v1228 = vpop.f32.mrb[0].mxu0
  %v1229 = vadd.f32 %v1044, %v1228
  %v1230 = vpop.f32.mrb[0].mxu0
  %1231 = vmatprep.mubr.bf16.mxu0 0
  %1232 = vmatmul.mubr.bf16.gmra.mrb[0].mxu0 %v862
  %v1233 = vpop.f32.mrb[0].mxu0
  %v1234 = vadd.f32 %v1049, %v1233
  %v1235 = vpop.f32.mrb[0].mxu0
  %v1236 = vpop.f32.mrb[0].mxu0
  %v1237 = vadd.f32 %v1052, %v1236
  %v1238 = vpop.f32.mrb[0].mxu0
  %1239 = vmatprep.mubr.bf16.mxu0 0
  %1240 = vmatmul.mubr.bf16.gmra.mrb[0].mxu0 %v865
  %v1241 = vpop.f32.mrb[0].mxu0
  %v1242 = vadd.f32 %v1057, %v1241
  %v1243 = vpop.f32.mrb[0].mxu0
  %v1244 = vpop.f32.mrb[0].mxu0
  %v1245 = vadd.f32 %v1060, %v1244
  %v1246 = vpop.f32.mrb[0].mxu0
  %1247 = vmatprep.mubr.bf16.mxu0 0
  %1248 = vmatmul.mubr.bf16.gmra.mrb[0].mxu0 %v868
  %v1249 = vpop.f32.mrb[0].mxu0
  %v1250 = vadd.f32 %v1065, %v1249
  %v1251 = vpop.f32.mrb[0].mxu0
  %v1252 = vpop.f32.mrb[0].mxu0
  %v1253 = vadd.f32 %v1068, %v1252
  %v1254 = vpop.f32.mrb[0].mxu0
  %1255 = vmatprep.mubr.bf16.mxu0 0
  %1256 = vmatmul.mubr.bf16.gmra.mrb[0].mxu0 %v871
  %v1257 = vpop.f32.mrb[0].mxu0
  %v1258 = vadd.f32 %v1073, %v1257
  %v1259 = vpop.f32.mrb[0].mxu0
  %v1260 = vpop.f32.mrb[0].mxu0
  %v1261 = vadd.f32 %v1076, %v1260
  %v1262 = vpop.f32.mrb[0].mxu0
  %1263 = vmatprep.mubr.bf16.mxu0 0
  %1264 = vmatmul.mubr.bf16.gmra.mrb[0].mxu0 %v874
  %v1265 = vpop.f32.mrb[0].mxu0
  %v1266 = vadd.f32 %v1081, %v1265
  %v1267 = vpop.f32.mrb[0].mxu0
  %v1268 = vpop.f32.mrb[0].mxu0
  %v1269 = vadd.f32 %v1084, %v1268
  %v1270 = vpop.f32.mrb[0].mxu0
  %1271 = vmatprep.mubr.bf16.mxu0 0
  %1272 = vmatmul.mubr.bf16.gmra.mrb[0].mxu0 %v877
  %v1273 = vpop.f32.mrb[0].mxu0
  %v1274 = vadd.f32 %v1089, %v1273
  %v1275 = vpop.f32.mrb[0].mxu0
  %v1276 = vpop.f32.mrb[0].mxu0
  %v1277 = vadd.f32 %v1092, %v1276
  %v1278 = vpop.f32.mrb[0].mxu0
  %1279 = vmatprep.mubr.bf16.mxu0 0
  %1280 = vmatmul.mubr.bf16.gmra.mrb[0].mxu0 %v880
  %v1281 = vpop.f32.mrb[0].mxu0
  %v1282 = vadd.f32 %v1097, %v1281
  %v1283 = vpop.f32.mrb[0].mxu0
  %v1284 = vpop.f32.mrb[0].mxu0
  %v1285 = vadd.f32 %v1100, %v1284
  %v1286 = vpop.f32.mrb[0].mxu0
  %1287 = vmatprep.mubr.bf16.mxu0 0
  %1288 = vmatmul.mubr.bf16.gmra.mrb[0].mxu0 %v883
  %v1289 = vpop.f32.mrb[0].mxu0
  %v1290 = vadd.f32 %v1105, %v1289
  %v1291 = vpop.f32.mrb[0].mxu0
  %v1292 = vpop.f32.mrb[0].mxu0
  %v1293 = vadd.f32 %v1108, %v1292
  %v1294 = vpop.f32.mrb[0].mxu0
  %1295 = vmatprep.mubr.bf16.mxu0 0
  %1296 = vmatmul.mubr.bf16.gmra.mrb[0].mxu0 %v886
  %v1297 = vpop.f32.mrb[0].mxu0
  %v1298 = vadd.f32 %v1113, %v1297
  %v1299 = vpop.f32.mrb[0].mxu0
  %v1300 = vpop.f32.mrb[0].mxu0
  %v1301 = vadd.f32 %v1116, %v1300
  %v1302 = vpop.f32.mrb[0].mxu0
  %1303 = vmatprep.mubr.bf16.mxu0 0
  %1304 = vmatmul.mubr.bf16.gmra.mrb[0].mxu0 %v889
  %v1305 = vpop.f32.mrb[0].mxu0
  %v1306 = vadd.f32 %v1121, %v1305
  %v1307 = vpop.f32.mrb[0].mxu0
  %v1308 = vpop.f32.mrb[0].mxu0
  %v1309 = vadd.f32 %v1124, %v1308
  %v1310 = vpop.f32.mrb[0].mxu0
  %1311 = vmatprep.mubr.bf16.mxu0 0
  %1312 = vmatmul.mubr.bf16.gmra.mrb[0].mxu0 %v892
  %v1313 = vpop.f32.mrb[0].mxu0
  %v1314 = vadd.f32 %v1129, %v1313
  %v1315 = vpop.f32.mrb[0].mxu0
  %v1316 = vpop.f32.mrb[0].mxu0
  %v1317 = vadd.f32 %v1132, %v1316
  %v1318 = vpop.f32.mrb[0].mxu0
  %1319 = vdwg.mxu0
  %v1320 = vmax.f32 %v1170, 0.0
  %v1321 = vmax.f32 %v1173, 0.0
  %v1322 = vmax.f32 %v1178, 0.0
  %v1323 = vmax.f32 %v1181, 0.0
  %v1324 = vmax.f32 %v1186, 0.0
  %v1325 = vmax.f32 %v1189, 0.0
  %v1326 = vmax.f32 %v1194, 0.0
  %v1327 = vmax.f32 %v1197, 0.0
  %v1328 = vmax.f32 %v1202, 0.0
  %v1329 = vmax.f32 %v1205, 0.0
  %v1330 = vmax.f32 %v1210, 0.0
  %v1331 = vmax.f32 %v1213, 0.0
  %v1332 = vmax.f32 %v1218, 0.0
  %v1333 = vmax.f32 %v1221, 0.0
  %v1334 = vmax.f32 %v1226, 0.0
  %v1335 = vmax.f32 %v1229, 0.0
  %v1336 = vmax.f32 %v1234, 0.0
  %v1337 = vmax.f32 %v1237, 0.0
  %v1338 = vmax.f32 %v1242, 0.0
  %v1339 = vmax.f32 %v1245, 0.0
  %v1340 = vmax.f32 %v1250, 0.0
  %v1341 = vmax.f32 %v1253, 0.0
  %v1342 = vmax.f32 %v1258, 0.0
  %v1343 = vmax.f32 %v1261, 0.0
  %v1344 = vmax.f32 %v1266, 0.0
  %v1345 = vmax.f32 %v1269, 0.0
  %v1346 = vmax.f32 %v1274, 0.0
  %v1347 = vmax.f32 %v1277, 0.0
  %v1348 = vmax.f32 %v1282, 0.0
  %v1349 = vmax.f32 %v1285, 0.0
  %v1350 = vmax.f32 %v1290, 0.0
  %v1351 = vmax.f32 %v1293, 0.0
  %v1352 = vmax.f32 %v1298, 0.0
  %v1353 = vmax.f32 %v1301, 0.0
  %v1354 = vmax.f32 %v1306, 0.0
  %v1355 = vmax.f32 %v1309, 0.0
  %v1356 = vmax.f32 %v1314, 0.0
  %v1357 = vmax.f32 %v1317, 0.0
  %v1358 = vld [vmem:[%s3] sm:$0xff]
  %v1359 = vld [vmem:[%s3 + $0x8] sm:$0xff]
  %v1360 = vld [vmem:[%s3 + $0x10] sm:$0xff]
  %v1361 = vld [vmem:[%s3 + $0x18] sm:$0xff]
  %v1362 = vld [vmem:[%s3 + $0x20] sm:$0xff]
  %v1363 = vld [vmem:[%s3 + $0x28] sm:$0xff]
  %v1364 = vld [vmem:[%s3 + $0x30] sm:$0xff]
  %v1365 = vld [vmem:[%s3 + $0x38] sm:$0xff]
  %v1366 = vld [vmem:[%s3 + $0x40] sm:$0xff]
  %v1367 = vld [vmem:[%s3 + $0x48] sm:$0xff]
  %v1368 = vld [vmem:[%s3 + $0x50] sm:$0xff]
  %v1369 = vld [vmem:[%s3 + $0x58] sm:$0xff]
  %v1370 = vld [vmem:[%s3 + $0x60] sm:$0xff]
  %v1371 = vld [vmem:[%s3 + $0x68] sm:$0xff]
  %v1372 = vld [vmem:[%s3 + $0x70] sm:$0xff]
  %v1373 = vld [vmem:[%s3 + $0x78] sm:$0xff]
  %v1374 = vld [vmem:[%s3 + $0x80] sm:$0xff]
  %v1375 = vld [vmem:[%s3 + $0x88] sm:$0xff]
  %v1376 = vld [vmem:[%s3 + $0x90] sm:$0xff]
  %v1377 = vld [vmem:[%s3 + $0x98] sm:$0xff]
  %v1378 = vld [vmem:[%s3 + $0xa0] sm:$0xff]
  %v1379 = vld [vmem:[%s3 + $0xa8] sm:$0xff]
  %v1380 = vld [vmem:[%s3 + $0xb0] sm:$0xff]
  %v1381 = vld [vmem:[%s3 + $0xb8] sm:$0xff]
  %v1382 = vld [vmem:[%s3 + $0xc0] sm:$0xff]
  %v1383 = vld [vmem:[%s3 + $0xc8] sm:$0xff]
  %v1384 = vld [vmem:[%s3 + $0xd0] sm:$0xff]
  %v1385 = vld [vmem:[%s3 + $0xd8] sm:$0xff]
  %v1386 = vld [vmem:[%s3 + $0xe0] sm:$0xff]
  %v1387 = vld [vmem:[%s3 + $0xe8] sm:$0xff]
  %v1388 = vld [vmem:[%s3 + $0xf0] sm:$0xff]
  %v1389 = vld [vmem:[%s3 + $0xf8] sm:$0xff]
  %v1390 = vld [vmem:[%s3 + $0x100] sm:$0xff]
  %v1391 = vld [vmem:[%s3 + $0x108] sm:$0xff]
  %v1392 = vld [vmem:[%s3 + $0x110] sm:$0xff]
  %v1393 = vld [vmem:[%s3 + $0x118] sm:$0xff]
  %v1394 = vld [vmem:[%s3 + $0x120] sm:$0xff]
  %v1395 = vld [vmem:[%s3 + $0x128] sm:$0xff]
  %1397 = vset.pattern.permute.xlu0 0
  %1398 = vperm.xlu0 %1397, %v1358
  %v1399 = vpop.permute.xlu0 %1398
  %1402 = vset.pattern.permute.xlu0 0
  %1403 = vperm.xlu0 %1402, %v1359
  %v1404 = vpop.permute.xlu0 %1403
  %1407 = vset.pattern.permute.xlu0 0
  %1408 = vperm.xlu0 %1407, %v1360
  %v1409 = vpop.permute.xlu0 %1408
  %1412 = vset.pattern.permute.xlu0 0
  %1413 = vperm.xlu0 %1412, %v1361
  %v1414 = vpop.permute.xlu0 %1413
  %1417 = vset.pattern.permute.xlu0 0
  %1418 = vperm.xlu0 %1417, %v1362
  %v1419 = vpop.permute.xlu0 %1418
  %1422 = vset.pattern.permute.xlu0 0
  %1423 = vperm.xlu0 %1422, %v1363
  %v1424 = vpop.permute.xlu0 %1423
  %1427 = vset.pattern.permute.xlu0 0
  %1428 = vperm.xlu0 %1427, %v1364
  %v1429 = vpop.permute.xlu0 %1428
  %1432 = vset.pattern.permute.xlu0 0
  %1433 = vperm.xlu0 %1432, %v1365
  %v1434 = vpop.permute.xlu0 %1433
  %1437 = vset.pattern.permute.xlu0 0
  %1438 = vperm.xlu0 %1437, %v1366
  %v1439 = vpop.permute.xlu0 %1438
  %1442 = vset.pattern.permute.xlu0 0
  %1443 = vperm.xlu0 %1442, %v1367
  %v1444 = vpop.permute.xlu0 %1443
  %1447 = vset.pattern.permute.xlu0 0
  %1448 = vperm.xlu0 %1447, %v1368
  %v1449 = vpop.permute.xlu0 %1448
  %1452 = vset.pattern.permute.xlu0 0
  %1453 = vperm.xlu0 %1452, %v1369
  %v1454 = vpop.permute.xlu0 %1453
  %1457 = vset.pattern.permute.xlu0 0
  %1458 = vperm.xlu0 %1457, %v1370
  %v1459 = vpop.permute.xlu0 %1458
  %1462 = vset.pattern.permute.xlu0 0
  %1463 = vperm.xlu0 %1462, %v1371
  %v1464 = vpop.permute.xlu0 %1463
  %1467 = vset.pattern.permute.xlu0 0
  %1468 = vperm.xlu0 %1467, %v1372
  %v1469 = vpop.permute.xlu0 %1468
  %1472 = vset.pattern.permute.xlu0 0
  %1473 = vperm.xlu0 %1472, %v1373
  %v1474 = vpop.permute.xlu0 %1473
  %1477 = vset.pattern.permute.xlu0 0
  %1478 = vperm.xlu0 %1477, %v1374
  %v1479 = vpop.permute.xlu0 %1478
  %1482 = vset.pattern.permute.xlu0 0
  %1483 = vperm.xlu0 %1482, %v1375
  %v1484 = vpop.permute.xlu0 %1483
  %1487 = vset.pattern.permute.xlu0 0
  %1488 = vperm.xlu0 %1487, %v1376
  %v1489 = vpop.permute.xlu0 %1488
  %1492 = vset.pattern.permute.xlu0 0
  %1493 = vperm.xlu0 %1492, %v1377
  %v1494 = vpop.permute.xlu0 %1493
  %1497 = vset.pattern.permute.xlu0 0
  %1498 = vperm.xlu0 %1497, %v1378
  %v1499 = vpop.permute.xlu0 %1498
  %1502 = vset.pattern.permute.xlu0 0
  %1503 = vperm.xlu0 %1502, %v1379
  %v1504 = vpop.permute.xlu0 %1503
  %1507 = vset.pattern.permute.xlu0 0
  %1508 = vperm.xlu0 %1507, %v1380
  %v1509 = vpop.permute.xlu0 %1508
  %1512 = vset.pattern.permute.xlu0 0
  %1513 = vperm.xlu0 %1512, %v1381
  %v1514 = vpop.permute.xlu0 %1513
  %1517 = vset.pattern.permute.xlu0 0
  %1518 = vperm.xlu0 %1517, %v1382
  %v1519 = vpop.permute.xlu0 %1518
  %1522 = vset.pattern.permute.xlu0 0
  %1523 = vperm.xlu0 %1522, %v1383
  %v1524 = vpop.permute.xlu0 %1523
  %1527 = vset.pattern.permute.xlu0 0
  %1528 = vperm.xlu0 %1527, %v1384
  %v1529 = vpop.permute.xlu0 %1528
  %1532 = vset.pattern.permute.xlu0 0
  %1533 = vperm.xlu0 %1532, %v1385
  %v1534 = vpop.permute.xlu0 %1533
  %1537 = vset.pattern.permute.xlu0 0
  %1538 = vperm.xlu0 %1537, %v1386
  %v1539 = vpop.permute.xlu0 %1538
  %1542 = vset.pattern.permute.xlu0 0
  %1543 = vperm.xlu0 %1542, %v1387
  %v1544 = vpop.permute.xlu0 %1543
  %1547 = vset.pattern.permute.xlu0 0
  %1548 = vperm.xlu0 %1547, %v1388
  %v1549 = vpop.permute.xlu0 %1548
  %1552 = vset.pattern.permute.xlu0 0
  %1553 = vperm.xlu0 %1552, %v1389
  %v1554 = vpop.permute.xlu0 %1553
  %1557 = vset.pattern.permute.xlu0 0
  %1558 = vperm.xlu0 %1557, %v1390
  %v1559 = vpop.permute.xlu0 %1558
  %1562 = vset.pattern.permute.xlu0 0
  %1563 = vperm.xlu0 %1562, %v1391
  %v1564 = vpop.permute.xlu0 %1563
  %1567 = vset.pattern.permute.xlu0 0
  %1568 = vperm.xlu0 %1567, %v1392
  %v1569 = vpop.permute.xlu0 %1568
  %1572 = vset.pattern.permute.xlu0 0
  %1573 = vperm.xlu0 %1572, %v1393
  %v1574 = vpop.permute.xlu0 %1573
  %1577 = vset.pattern.permute.xlu0 0
  %1578 = vperm.xlu0 %1577, %v1394
  %v1579 = vpop.permute.xlu0 %1578
  %1582 = vset.pattern.permute.xlu0 0
  %1583 = vperm.xlu0 %1582, %v1395
  %v1584 = vpop.permute.xlu0 %1583
  %v1586 = vmul.f32 %v1320, %v1399
  %v1587 = vmul.f32 %v1321, %v1404
  %v1588 = vmul.f32 %v1322, %v1409
  %v1589 = vmul.f32 %v1323, %v1414
  %v1590 = vmul.f32 %v1324, %v1419
  %v1591 = vmul.f32 %v1325, %v1424
  %v1592 = vmul.f32 %v1326, %v1429
  %v1593 = vmul.f32 %v1327, %v1434
  %v1594 = vmul.f32 %v1328, %v1439
  %v1595 = vmul.f32 %v1329, %v1444
  %v1596 = vmul.f32 %v1330, %v1449
  %v1597 = vmul.f32 %v1331, %v1454
  %v1598 = vmul.f32 %v1332, %v1459
  %v1599 = vmul.f32 %v1333, %v1464
  %v1600 = vmul.f32 %v1334, %v1469
  %v1601 = vmul.f32 %v1335, %v1474
  %v1602 = vmul.f32 %v1336, %v1479
  %v1603 = vmul.f32 %v1337, %v1484
  %v1604 = vmul.f32 %v1338, %v1489
  %v1605 = vmul.f32 %v1339, %v1494
  %v1606 = vmul.f32 %v1340, %v1499
  %v1607 = vmul.f32 %v1341, %v1504
  %v1608 = vmul.f32 %v1342, %v1509
  %v1609 = vmul.f32 %v1343, %v1514
  %v1610 = vmul.f32 %v1344, %v1519
  %v1611 = vmul.f32 %v1345, %v1524
  %v1612 = vmul.f32 %v1346, %v1529
  %v1613 = vmul.f32 %v1347, %v1534
  %v1614 = vmul.f32 %v1348, %v1539
  %v1615 = vmul.f32 %v1349, %v1544
  %v1616 = vmul.f32 %v1350, %v1549
  %v1617 = vmul.f32 %v1351, %v1554
  %v1618 = vmul.f32 %v1352, %v1559
  %v1619 = vmul.f32 %v1353, %v1564
  %v1620 = vmul.f32 %v1354, %v1569
  %v1621 = vmul.f32 %v1355, %v1574
  %v1622 = vmul.f32 %v1356, %v1579
  %v1623 = vmul.f32 %v1357, %v1584
  %v1624 = vadd.f32 %v1586, %v1587
  %v1625 = vadd.f32 %v1624, %v1588
  %v1626 = vadd.f32 %v1625, %v1589
  %v1627 = vadd.f32 %v1626, %v1590
  %v1628 = vadd.f32 %v1627, %v1591
  %v1629 = vadd.f32 %v1628, %v1592
  %v1630 = vadd.f32 %v1629, %v1593
  %v1631 = vadd.f32 %v1630, %v1594
  %v1632 = vadd.f32 %v1631, %v1595
  %v1633 = vadd.f32 %v1632, %v1596
  %v1634 = vadd.f32 %v1633, %v1597
  %v1635 = vadd.f32 %v1634, %v1598
  %v1636 = vadd.f32 %v1635, %v1599
  %v1637 = vadd.f32 %v1636, %v1600
  %v1638 = vadd.f32 %v1637, %v1601
  %v1639 = vadd.f32 %v1638, %v1602
  %v1640 = vadd.f32 %v1639, %v1603
  %v1641 = vadd.f32 %v1640, %v1604
  %v1642 = vadd.f32 %v1641, %v1605
  %v1643 = vadd.f32 %v1642, %v1606
  %v1644 = vadd.f32 %v1643, %v1607
  %v1645 = vadd.f32 %v1644, %v1608
  %v1646 = vadd.f32 %v1645, %v1609
  %v1647 = vadd.f32 %v1646, %v1610
  %v1648 = vadd.f32 %v1647, %v1611
  %v1649 = vadd.f32 %v1648, %v1612
  %v1650 = vadd.f32 %v1649, %v1613
  %v1651 = vadd.f32 %v1650, %v1614
  %v1652 = vadd.f32 %v1651, %v1615
  %v1653 = vadd.f32 %v1652, %v1616
  %v1654 = vadd.f32 %v1653, %v1617
  %v1655 = vadd.f32 %v1654, %v1618
  %v1656 = vadd.f32 %v1655, %v1619
  %v1657 = vadd.f32 %v1656, %v1620
  %v1658 = vadd.f32 %v1657, %v1621
  %v1659 = vadd.f32 %v1658, %v1622
  %v1660 = vadd.f32 %v1659, %v1623
  %v1661 = vrot.slane %v1660, 4
  %v1662 = vadd.f32 %v1660, %v1661
  %v1663 = vrot.slane %v1662, 2
  %v1664 = vadd.f32 %v1662, %v1663
  %v1665 = vrot.slane %v1664, 1
  %v1666 = vadd.f32 %v1664, %v1665
  %v1667 = vmax.f32 %v1666, 0.0
  %1668 = vst [vmem:[%s4] sm:$0x1] %v1667
  // Predicated region
  $region18: #{maxnet_forward.1} parent=0 // pred_check
    _
  $region19: #{maxnet_forward.1} parent=0 // pred_check_branch
    %1670 = sbr.rel (0) target = $region21
  $region20: #{maxnet_forward.1} parent=0 // pred_region
    _
  $region21: #{maxnet_forward.1} parent=0 // pred_fallthru
    _
  // Predicated region
  $region22: #{maxnet_forward.1} parent=0 // pred_check
    _
  $region23: #{maxnet_forward.1} parent=0 // pred_check_branch
    %1672 = sbr.rel (0) target = $region25
  $region24: #{maxnet_forward.1} parent=0 // pred_region
    _
  $region25: #{maxnet_forward.1} parent=0 // pred_fallthru
    _

</llo_original>
